<compile_context>
chip_gen: v7x
topology: tpu7x:2x2x1
jax: 0.10.0
libtpu: 0.0.40
codegen_flags: <defaults>
</compile_context>

<pallas_src>
import jax
import jax.numpy as jnp
from jax.experimental import pallas as pl
from jax.experimental.pallas import tpu as pltpu


def _identity_kernel(x_ref, o_ref):
    # Pure pass-through on the current VMEM tile.
    o_ref[...] = x_ref[...]


# itemsize (bytes) -> sublane packing multiple (f32:8, bf16/f16:16, int8/fp8:32)
_SUBLANE_MULT = {4: 8, 2: 16, 1: 32}
# Lane-dense last-dim candidates (large multiples of 128 first).
_LANE_CANDIDATES = (4096, 2048, 1024, 512, 256, 128)
# Only force a multi-tile grid (for v7x's 2 TCs) past this size.
_SPLIT_BYTES_THRESHOLD = 2 << 20


def _tile_byte_budget() -> int:
    """Generation-aware per-tile byte budget."""
    try:
        vmem = pltpu.get_tpu_info().vmem_capacity_bytes
    except Exception:  # pragma: no cover - conservative default
        vmem = 64 << 20
    # v5e/v6e (128 MiB VMEM): 8 MiB tiles; v7x (64 MiB physical): 4 MiB tiles.
    return (8 << 20) if vmem >= (100 << 20) else (4 << 20)


def _pallas_copy_2d(x2d: jnp.ndarray) -> jnp.ndarray:
    """Tiled, lane-dense VMEM copy of a 2D array (rows, cols) with cols % 128 == 0
    or cols == full extent."""
    rows, cols = x2d.shape
    itemsize = jnp.dtype(x2d.dtype).itemsize
    sublane = _SUBLANE_MULT.get(itemsize, 8)

    # Byte-budgeted row tile, snapped to the dtype's sublane multiple.
    budget = _tile_byte_budget()
    tile_r = max(1, budget // max(1, cols * itemsize))
    tile_r = min(tile_r, rows)
    if tile_r >= sublane:
        tile_r = (tile_r // sublane) * sublane
    else:
        # Tiny arrays: take the full row extent (legal: block dim == array dim).
        tile_r = rows

    total_bytes = rows * cols * itemsize
    # v7x has 2 TensorCores: a single-tile grid leaves one idle.  For tensors
    # big enough to matter, split into (at least) two tiles.
    if (total_bytes >= _SPLIT_BYTES_THRESHOLD
            and pl.cdiv(rows, tile_r) == 1
            and rows >= 2 * sublane):
        half = pl.cdiv(rows, 2)
        tile_r = max(sublane, ((half + sublane - 1) // sublane) * sublane)

    grid = (pl.cdiv(rows, tile_r),)

    # In + out, each double-buffered ≈ 4 live tiles; add a few MiB of margin.
    tile_bytes = tile_r * cols * itemsize
    vmem_limit = min(max(4 * tile_bytes + (4 << 20), 16 << 20), 48 << 20)

    return pl.pallas_call(
        _identity_kernel,
        out_shape=jax.ShapeDtypeStruct((rows, cols), x2d.dtype),
        grid=grid,
        in_specs=[pl.BlockSpec((tile_r, cols), lambda i: (i, 0))],
        out_specs=pl.BlockSpec((tile_r, cols), lambda i: (i, 0)),
        compiler_params=pltpu.CompilerParams(
            dimension_semantics=("parallel",),
            vmem_limit_bytes=vmem_limit,
        ),
    )(x2d)


def identity(x: jnp.ndarray) -> jnp.ndarray:
    """Identity forward pass: return x unchanged.

    The optimal Identity is zero HBM traffic and no kernel launch, so this
    simply returns the input (same shape, same dtype, same buffer)."""
    return x


def identity_copy(x: jnp.ndarray) -> jnp.ndarray:
    """Materialized identity via a Pallas HBM-roofline copy kernel.

    Use only when an independent output buffer is explicitly required."""
    orig_shape = x.shape
    numel = int(x.size)
    if numel == 0:
        return x

    flat = x.reshape(numel)
    pad = (-numel) % 128
    if pad:
        # Pad to a lane-dense multiple of 128 so every vst is full-lane;
        # sliced back off after the copy.
        flat = jnp.pad(flat, (0, pad))
    padded = numel + pad

    lane = 128
    for cand in _LANE_CANDIDATES:
        if padded % cand == 0:
            lane = cand
            break
    rows = padded // lane

    out2d = _pallas_copy_2d(flat.reshape(rows, lane))
    out_flat = out2d.reshape(padded)
    if pad:
        out_flat = out_flat[:numel]
    return out_flat.reshape(orig_shape)


if __name__ == "__main__":
    key = jax.random.PRNGKey(0)
    # Small NCHW input consistent with a backbone feature map.
    x = jax.random.normal(key, (2, 4, 16, 16), dtype=jnp.float32)

    # True Identity path: no kernel, no copy.
    y = identity(x)
    assert y.shape == x.shape and y.dtype == x.dtype

    # Pallas copy path (exercises the kernel once).
    y_copy = jax.block_until_ready(identity_copy(x))
    assert y_copy.shape == x.shape, (y_copy.shape, x.shape)
    assert y_copy.dtype == x.dtype, (y_copy.dtype, x.dtype)
    assert bool(jnp.all(y_copy == x)), "Identity kernel output mismatch"

    # Also exercise the padded (numel % 128 != 0) path with a tiny tensor.
    x_odd = jax.random.normal(jax.random.PRNGKey(1), (3, 7, 5), dtype=jnp.float32)
    y_odd = jax.block_until_ready(identity_copy(x_odd))
    assert y_odd.shape == x_odd.shape and y_odd.dtype == x_odd.dtype
    assert bool(jnp.all(y_odd == x_odd)), "Identity kernel (padded path) mismatch"

    print("KERNEL_OK")
</pallas_src>

<mosaic_0001>
module attributes {stable_mosaic.version = 11 : i64} {
  func.func @_identity_kernel(%arg0: i32, %arg1: memref<1x2048xf32, #tpu.memory_space<vmem>>, %arg2: memref<1x2048xf32, #tpu.memory_space<vmem>>) attributes {dimension_semantics = [#tpu.dimension_semantics<parallel>], iteration_bounds = array<i64: 1>, scalar_prefetch = 0 : i64, scratch_operands = 0 : i64, tpu.core_type = #tpu.core_type<tc>, window_params = [{transform_indices = @transform_0, window_bounds = array<i64: 1, 2048>}, {transform_indices = @transform_1, window_bounds = array<i64: 1, 2048>}]} {
    %c0 = arith.constant 0 : index
    %c0_0 = arith.constant 0 : index
    %0 = vector.load %arg1[%c0, %c0_0] : memref<1x2048xf32, #tpu.memory_space<vmem>>, vector<1x2048xf32>
    %c0_1 = arith.constant 0 : index
    %c0_2 = arith.constant 0 : index
    %1 = vector.load %arg2[%c0_1, %c0_2] : memref<1x2048xf32, #tpu.memory_space<vmem>>, vector<1x2048xf32>
    tpu.vector_store %arg2[%c0_1, %c0_2], %0 {strides = array<i32>} : memref<1x2048xf32, #tpu.memory_space<vmem>>, vector<1x2048xf32>,
    return
  }
  func.func @transform_0(%arg0: i32) -> (i32, i32) {
    %c0_i32 = arith.constant 0 : i32
    %c0_i32_0 = arith.constant 0 : i32
    return %arg0, %c0_i32 : i32, i32
  }
  func.func @transform_1(%arg0: i32) -> (i32, i32) {
    %c0_i32 = arith.constant 0 : i32
    %c0_i32_0 = arith.constant 0 : i32
    return %arg0, %c0_i32 : i32, i32
  }
}

</mosaic_0001>

<llo_original>
// kernel: tpu_custom_call.1
$region0: #{tpu_custom_call.1}
  #allocation0 [shape = 'u32[]', space=smem, size = 0x4, offset = 0x4, fixed_abs, tag = 'smem constant byte address 0x4 - core index']
  #allocation1 [shape = 'u32[144,128]{1,0:T(1,128)}', space=vmem, size = 0x12000, scoped, tag = 'internal scratch']
  %s0 = inlined_call_operand.hbm [shape: f32[1,2048], index: 0, kind: input, shape index: {}]
  %s1 = inlined_call_operand.hbm [shape: f32[1,2048], index: 1, kind: output, shape index: {}]
  %s2 = sld [smem:[#allocation0]]
  $region18: #{tpu_custom_call.1} parent=0
    _
  %s4 = ssub.s32 1, %s2
  %s5 = scalar_select 0, %s4, %s2
  $region1: #{tpu_custom_call.1} parent=0
    #allocation2 [shape = 'u8[8192]{0}', space=vmem, size = 0x2000, scoped, tag = 'input window, operand 0, single buffered']
    #allocation3 [shape = 's32[1]{0}', space=sflag, size = 0x4, scoped, tag = 'scoped memory for tpu_custom_call.1']
    #allocation4 [shape = 's32[1]{0}', space=sflag, size = 0x4, scoped, tag = 'scoped memory for tpu_custom_call.1']
    #allocation5 [shape = 'u8[8192]{0}', space=vmem, size = 0x2000, scoped, tag = 'output window, operand 0, single buffered']
    %6 = vsyncpa [#allocation3], 0
    %7 = vsyncpa [#allocation4], 0
    // Predicated region
    $region2: #{tpu_custom_call.1} parent=1 // pred_check
      _
    $region3: #{tpu_custom_call.1} parent=1 // pred_check_branch
      %9 = sbr.rel (0) target = $region5
    $region4: #{tpu_custom_call.1} parent=1 // pred_region
      %s11 = ssub.s32 256, 256
      %12 = vsyncadd [#allocation3], %s11
      %s14 = sshll.u32 [#allocation2], 4
      %s15 = int_to_ptr.vmem [resolvable:$true] %s14
      %17 = dma.hbm_to_vmem [thread:$0]  %s0, 256, %s15, [#allocation3]
    $region5: #{tpu_custom_call.1} parent=1 // pred_fallthru
      _
    // Predicated region
    $region6: #{tpu_custom_call.1} parent=1 // pred_check
      _
    $region7: #{tpu_custom_call.1} parent=1 // pred_check_branch
      %19 = sbr.rel (0) target = $region9
    $region8: #{tpu_custom_call.1} parent=1 // pred_region
      %20 = dma.done [#allocation3], 256
    $region9: #{tpu_custom_call.1} parent=1 // pred_fallthru
      _
    %v21 = vld [vmem:[#allocation2] sm:$0xff]
    %v22 = vld [vmem:[#allocation2 + $0x8] sm:$0xff]
    %23 = vst [vmem:[#allocation5] sm:$0xff] %v21
    %24 = vst [vmem:[#allocation5 + $0x8] sm:$0xff] %v22
    // Predicated region
    $region10: #{tpu_custom_call.1} parent=1 // pred_check
      _
    $region11: #{tpu_custom_call.1} parent=1 // pred_check_branch
      %26 = sbr.rel (0) target = $region13
    $region12: #{tpu_custom_call.1} parent=1 // pred_region
      %s28 = ssub.s32 256, 256
      %29 = vsyncadd [#allocation4], %s28
      %s31 = sshll.u32 [#allocation5], 4
      %s32 = int_to_ptr.vmem [resolvable:$true] %s31
      %34 = dma.vmem_to_hbm [thread:$0]  %s32, 256, %s1, [#allocation4]
    $region13: #{tpu_custom_call.1} parent=1 // pred_fallthru
      _
    // Predicated region
    $region14: #{tpu_custom_call.1} parent=1 // pred_check
      _
    $region15: #{tpu_custom_call.1} parent=1 // pred_check_branch
      %36 = sbr.rel (0) target = $region17
    $region16: #{tpu_custom_call.1} parent=1 // pred_region
      %37 = dma.done [#allocation4], 256
    $region17: #{tpu_custom_call.1} parent=1 // pred_fallthru
      _
    %38 = vsyncpa [#allocation3], 1
    %39 = vsyncpa [#allocation4], 1

</llo_original>
